<compile_context>
chip_gen: v7x
topology: tpu7x:2x2x1
jax: 0.10.0
libtpu: 0.0.40
codegen_flags: <defaults>
</compile_context>

<pallas_src>
import functools

import jax
import jax.numpy as jnp
from jax.experimental import pallas as pl
from jax.experimental.pallas import tpu as pltpu


def _round_up(x, m):
    return ((x + m - 1) // m) * m


def _contrastive_kernel(x_row_ref, x_col_ref, loss_ref, l_sc, diag_sc,
                        *, inv_temp, tm, tk, n_valid, mask_cols):
    i = pl.program_id(0)            # row-tile index    ("parallel")
    k = pl.program_id(1)            # column-tile index ("arbitrary" / reduction)
    nk = pl.num_programs(1)

    # ---- once per row tile: init running sum and diagonal accumulator
    @pl.when(k == 0)
    def _():
        l_sc[...] = jnp.zeros_like(l_sc)
        diag_sc[...] = jnp.zeros_like(diag_sc)

    # ---- [tm, tk] logits tile on the MXU.  Rows are pre-normalized and
    # pre-scaled by 1/temp, columns are pre-normalized; the RHS "transpose" is
    # expressed via the contracting dims (no explicit relayout).
    s = jax.lax.dot_general(
        x_row_ref[...], x_col_ref[...],
        dimension_numbers=(((1,), (1,)), ((), ())),
        preferred_element_type=jnp.float32)

    row_start = i * tm
    col_start = k * tk

    # ---- the diagonal of this row tile lives only in column tiles overlapping
    # [row_start, row_start + tm).  Extract it from the (unmasked) MXU result so
    # it cancels exactly against the same values accumulated into l_sc.
    @pl.when(jnp.logical_and(col_start < row_start + tm,
                             row_start < col_start + tk))
    def _():
        row_g = row_start + jax.lax.broadcasted_iota(jnp.int32, (tm, tk), 0)
        col_g = col_start + jax.lax.broadcasted_iota(jnp.int32, (tm, tk), 1)
        diag_sc[...] += jnp.sum(jnp.where(row_g == col_g, s, 0.0),
                                axis=1, keepdims=True)

    # ---- online sum of exp(s - 1/temp).  cos <= 1  ==>  s <= 1/temp, so 1/temp
    # is a valid (and on the diagonal, tight) stabilizer: no running max needed.
    if mask_cols:
        is_last = k == nk - 1

        @pl.when(is_last)          # padded columns only exist in the last tile
        def _():
            col_g = col_start + jax.lax.broadcasted_iota(jnp.int32, (tm, tk), 1)
            s_m = jnp.where(col_g < n_valid, s, -jnp.inf)
            l_sc[...] += jnp.sum(jnp.exp(s_m - inv_temp), axis=1, keepdims=True)

        @pl.when(jnp.logical_not(is_last))
        def _():
            l_sc[...] += jnp.sum(jnp.exp(s - inv_temp), axis=1, keepdims=True)
    else:
        l_sc[...] += jnp.sum(jnp.exp(s - inv_temp), axis=1, keepdims=True)

    # ---- finalize: per-row loss = logsumexp - diag = 1/temp + log(l) - s_ii.
    @pl.when(k == nk - 1)
    def _():
        loss_ref[...] = (inv_temp + jnp.log(l_sc[...])) - diag_sc[...]


def contrastive_loss(features, temperature=0.05):
    """Pallas TPU implementation of ContrastiveLoss.forward (reduction='sum')."""
    n, d = features.shape
    inv_temp = 1.0 / float(temperature)

    # Tile selection: tm = tk = 256 for large n; for small n halve tm so the
    # "parallel" row axis has >= 2 tiles (keeps both v7x TensorCores busy).
    if n <= 512:
        tm = max(8, _round_up(_round_up(n, 16) // 2, 8))
        tk = _round_up(n, 8)          # single column tile for small n
    else:
        tm, tk = 256, 256

    n_pad_rows = _round_up(n, tm)     # rows and columns padded independently
    n_pad_cols = _round_up(n, tk)

    # ---- one O(n*d) pass: L2-normalize (F.normalize semantics: clamp eps=1e-12,
    # and rsqrt(max(||x||^2, 1e-24)) == 1/max(||x||, 1e-12) since sqrt is
    # monotone), and fold 1/temp into the row operand.
    x = features.astype(jnp.float32)
    inv_norm = jax.lax.rsqrt(
        jnp.maximum(jnp.sum(x * x, axis=1, keepdims=True), 1e-24))
    xn = x * inv_norm                       # unit-norm rows (column operand)
    xr = xn * inv_temp                      # 1/temp-scaled rows (row operand)

    if n_pad_rows != n:
        xr = jnp.pad(xr, ((0, n_pad_rows - n), (0, 0)))
    if n_pad_cols != n:
        xn = jnp.pad(xn, ((0, n_pad_cols - n), (0, 0)))

    grid = (n_pad_rows // tm, n_pad_cols // tk)
    kernel = functools.partial(
        _contrastive_kernel,
        inv_temp=inv_temp, tm=tm, tk=tk,
        n_valid=n, mask_cols=(n_pad_cols != n))

    per_row = pl.pallas_call(
        kernel,
        out_shape=jax.ShapeDtypeStruct((n_pad_rows, 1), jnp.float32),
        grid_spec=pltpu.PrefetchScalarGridSpec(
            num_scalar_prefetch=0,
            grid=grid,
            in_specs=[
                pl.BlockSpec((tm, d), lambda i, k: (i, 0)),   # resident row block
                pl.BlockSpec((tk, d), lambda i, k: (k, 0)),   # streamed column block
            ],
            out_specs=pl.BlockSpec((tm, 1), lambda i, k: (i, 0)),
            scratch_shapes=[
                pltpu.VMEM((tm, 1), jnp.float32),   # running sum of exp(s - 1/temp)
                pltpu.VMEM((tm, 1), jnp.float32),   # diagonal logits
            ]),
        compiler_params=pltpu.CompilerParams(
            dimension_semantics=("parallel", "arbitrary"),
            vmem_limit_bytes=32 * 1024 * 1024),
    )(xr, xn)

    # reduction='sum' over the real rows only (padded rows are discarded here).
    return jnp.sum(per_row[:n, 0])


def _contrastive_loss_ref(features, temperature=0.05):
    """Pure-JAX reference (mirrors the PyTorch module)."""
    x = features.astype(jnp.float32)
    norm = jnp.maximum(jnp.linalg.norm(x, axis=1, keepdims=True), 1e-12)
    xn = x / norm
    logits = (xn @ xn.T) / temperature
    lse = jax.scipy.special.logsumexp(logits, axis=1)
    return jnp.sum(lse - jnp.diagonal(logits))


if __name__ == "__main__":
    key = jax.random.PRNGKey(0)
    k1, k2 = jax.random.split(key)

    # Small shape consistent with the module: batch of 8 feature vectors, dim 32.
    feats_small = jax.random.normal(k1, (8, 32), dtype=jnp.float32)
    loss_small = jax.block_until_ready(contrastive_loss(feats_small, 0.05))
    ref_small = _contrastive_loss_ref(feats_small, 0.05)
    assert jnp.allclose(loss_small, ref_small, rtol=1e-4, atol=1e-5), (
        loss_small, ref_small)

    # Larger batch exercising the tiled grid, independent row/col padding and
    # the last-tile column mask (n = 600 is not a multiple of the 256 tiles).
    feats_big = jax.random.normal(k2, (600, 32), dtype=jnp.float32)
    loss_big = jax.block_until_ready(contrastive_loss(feats_big, 0.05))
    ref_big = _contrastive_loss_ref(feats_big, 0.05)
    assert jnp.allclose(loss_big, ref_big, rtol=1e-4, atol=1e-4), (
        loss_big, ref_big)

    print("KERNEL_OK")
</pallas_src>

<mosaic_0001>
module attributes {stable_mosaic.version = 11 : i64} {
  func.func @_contrastive_kernel(%arg0: i32, %arg1: i32, %arg2: memref<8x32xf32, #tpu.memory_space<vmem>>, %arg3: memref<8x32xf32, #tpu.memory_space<vmem>>, %arg4: memref<8x1xf32, #tpu.memory_space<vmem>>, %arg5: memref<8x1xf32, #tpu.memory_space<vmem>>, %arg6: memref<8x1xf32, #tpu.memory_space<vmem>>) attributes {dimension_semantics = [#tpu.dimension_semantics<parallel>, #tpu.dimension_semantics<arbitrary>], iteration_bounds = array<i64: 1, 1>, scalar_prefetch = 0 : i64, scratch_operands = 2 : i64, tpu.core_type = #tpu.core_type<tc>, window_params = [{transform_indices = @transform_0, window_bounds = array<i64: 8, 32>}, {transform_indices = @transform_1, window_bounds = array<i64: 8, 32>}, {transform_indices = @transform_2, window_bounds = array<i64: 8, 1>}]} {
    %c0_i32 = arith.constant 0 : i32
    %0 = arith.cmpi eq, %arg1, %c0_i32 : i32
    %1 = arith.extui %0 : i1 to i32
    %c0_i32_0 = arith.constant 0 : i32
    %2 = arith.cmpi ne, %1, %c0_i32_0 : i32
    scf.if %2 {
      %cst_16 = arith.constant 0.000000e+00 : f32
      %26 = vector.broadcast %cst_16 : f32 to vector<8x1xf32>
      %c0_17 = arith.constant 0 : index
      %c0_18 = arith.constant 0 : index
      %27 = vector.load %arg5[%c0_17, %c0_18] : memref<8x1xf32, #tpu.memory_space<vmem>>, vector<8x1xf32>
      tpu.vector_store %arg5[%c0_17, %c0_18], %26 {strides = array<i32>} : memref<8x1xf32, #tpu.memory_space<vmem>>, vector<8x1xf32>,
      %cst_19 = arith.constant 0.000000e+00 : f32
      %28 = vector.broadcast %cst_19 : f32 to vector<8x1xf32>
      %c0_20 = arith.constant 0 : index
      %c0_21 = arith.constant 0 : index
      %29 = vector.load %arg6[%c0_20, %c0_21] : memref<8x1xf32, #tpu.memory_space<vmem>>, vector<8x1xf32>
      tpu.vector_store %arg6[%c0_20, %c0_21], %28 {strides = array<i32>} : memref<8x1xf32, #tpu.memory_space<vmem>>, vector<8x1xf32>,
    } else {
    }
    %c0 = arith.constant 0 : index
    %c0_1 = arith.constant 0 : index
    %3 = vector.load %arg2[%c0, %c0_1] : memref<8x32xf32, #tpu.memory_space<vmem>>, vector<8x32xf32>
    %c0_2 = arith.constant 0 : index
    %c0_3 = arith.constant 0 : index
    %4 = vector.load %arg3[%c0_2, %c0_3] : memref<8x32xf32, #tpu.memory_space<vmem>>, vector<8x32xf32>
    %cst = arith.constant dense<0.000000e+00> : vector<8x8xf32>
    %5 = tpu.matmul %3, %4, %cst {dimension_numbers = #tpu.dot_dimension_numbers<[1], [1], [0], [0], [0, 0, 1, 0], [], []>} : vector<8x32xf32>, vector<8x32xf32>, vector<8x8xf32> -> vector<8x8xf32>
    %c8_i32 = arith.constant 8 : i32
    %6 = arith.muli %arg0, %c8_i32 : i32
    %c8_i32_4 = arith.constant 8 : i32
    %7 = arith.muli %arg1, %c8_i32_4 : i32
    %c8_i32_5 = arith.constant 8 : i32
    %8 = arith.addi %6, %c8_i32_5 : i32
    %9 = arith.cmpi slt, %7, %8 : i32
    %c8_i32_6 = arith.constant 8 : i32
    %10 = arith.addi %7, %c8_i32_6 : i32
    %11 = arith.cmpi slt, %6, %10 : i32
    %12 = arith.andi %9, %11 : i1
    %13 = arith.extui %12 : i1 to i32
    %c0_i32_7 = arith.constant 0 : i32
    %14 = arith.cmpi ne, %13, %c0_i32_7 : i32
    scf.if %14 {
      %26 = tpu.iota {dimensions = array<i32: 0>} : vector<8x8xi32>
      %27 = vector.broadcast %6 : i32 to vector<8x8xi32>
      %28 = arith.addi %27, %26 : vector<8x8xi32>
      %29 = tpu.iota {dimensions = array<i32: 1>} : vector<8x8xi32>
      %30 = vector.broadcast %7 : i32 to vector<8x8xi32>
      %31 = arith.addi %30, %29 : vector<8x8xi32>
      %c0_16 = arith.constant 0 : index
      %c0_17 = arith.constant 0 : index
      %32 = vector.load %arg6[%c0_16, %c0_17] : memref<8x1xf32, #tpu.memory_space<vmem>>, vector<8x1xf32>
      %33 = arith.cmpi eq, %28, %31 : vector<8x8xi32>
      %cst_18 = arith.constant 0.000000e+00 : f32
      %34 = vector.broadcast %cst_18 : f32 to vector<8x8xf32>
      %35 = arith.select %33, %5, %34 : vector<8x8xi1>, vector<8x8xf32>
      %cst_19 = arith.constant dense<0.000000e+00> : vector<8xf32>
      %36 = vector.multi_reduction <add>, %35, %cst_19 [1] : vector<8x8xf32> to vector<8xf32>
      %37 = vector.shape_cast %36 : vector<8xf32> to vector<8x1xf32>
      %38 = arith.addf %32, %37 : vector<8x1xf32>
      %c0_20 = arith.constant 0 : index
      %c0_21 = arith.constant 0 : index
      %39 = vector.load %arg6[%c0_20, %c0_21] : memref<8x1xf32, #tpu.memory_space<vmem>>, vector<8x1xf32>
      tpu.vector_store %arg6[%c0_20, %c0_21], %38 {strides = array<i32>} : memref<8x1xf32, #tpu.memory_space<vmem>>, vector<8x1xf32>,
    } else {
    }
    %c0_8 = arith.constant 0 : index
    %c0_9 = arith.constant 0 : index
    %15 = vector.load %arg5[%c0_8, %c0_9] : memref<8x1xf32, #tpu.memory_space<vmem>>, vector<8x1xf32>
    %cst_10 = arith.constant 2.000000e+01 : f32
    %16 = vector.broadcast %cst_10 : f32 to vector<8x8xf32>
    %17 = arith.subf %5, %16 : vector<8x8xf32>
    %18 = math.exp %17 : vector<8x8xf32>
    %cst_11 = arith.constant dense<0.000000e+00> : vector<8xf32>
    %19 = vector.multi_reduction <add>, %18, %cst_11 [1] : vector<8x8xf32> to vector<8xf32>
    %20 = vector.shape_cast %19 : vector<8xf32> to vector<8x1xf32>
    %21 = arith.addf %15, %20 : vector<8x1xf32>
    %c0_12 = arith.constant 0 : index
    %c0_13 = arith.constant 0 : index
    %22 = vector.load %arg5[%c0_12, %c0_13] : memref<8x1xf32, #tpu.memory_space<vmem>>, vector<8x1xf32>
    tpu.vector_store %arg5[%c0_12, %c0_13], %21 {strides = array<i32>} : memref<8x1xf32, #tpu.memory_space<vmem>>, vector<8x1xf32>,
    %c0_i32_14 = arith.constant 0 : i32
    %23 = arith.cmpi eq, %arg1, %c0_i32_14 : i32
    %24 = arith.extui %23 : i1 to i32
    %c0_i32_15 = arith.constant 0 : i32
    %25 = arith.cmpi ne, %24, %c0_i32_15 : i32
    scf.if %25 {
      %c0_16 = arith.constant 0 : index
      %c0_17 = arith.constant 0 : index
      %26 = vector.load %arg5[%c0_16, %c0_17] : memref<8x1xf32, #tpu.memory_space<vmem>>, vector<8x1xf32>
      %27 = math.log %26 : vector<8x1xf32>
      %cst_18 = arith.constant 2.000000e+01 : f32
      %28 = vector.broadcast %cst_18 : f32 to vector<8x1xf32>
      %29 = arith.addf %28, %27 : vector<8x1xf32>
      %c0_19 = arith.constant 0 : index
      %c0_20 = arith.constant 0 : index
      %30 = vector.load %arg6[%c0_19, %c0_20] : memref<8x1xf32, #tpu.memory_space<vmem>>, vector<8x1xf32>
      %31 = arith.subf %29, %30 : vector<8x1xf32>
      %c0_21 = arith.constant 0 : index
      %c0_22 = arith.constant 0 : index
      %32 = vector.load %arg4[%c0_21, %c0_22] : memref<8x1xf32, #tpu.memory_space<vmem>>, vector<8x1xf32>
      tpu.vector_store %arg4[%c0_21, %c0_22], %31 {strides = array<i32>} : memref<8x1xf32, #tpu.memory_space<vmem>>, vector<8x1xf32>,
    } else {
    }
    return
  }
  func.func @transform_0(%arg0: i32, %arg1: i32) -> (i32, i32) {
    %c0_i32 = arith.constant 0 : i32
    %c0_i32_0 = arith.constant 0 : i32
    return %arg0, %c0_i32 : i32, i32
  }
  func.func @transform_1(%arg0: i32, %arg1: i32) -> (i32, i32) {
    %c0_i32 = arith.constant 0 : i32
    %c0_i32_0 = arith.constant 0 : i32
    return %arg1, %c0_i32 : i32, i32
  }
  func.func @transform_2(%arg0: i32, %arg1: i32) -> (i32, i32) {
    %c0_i32 = arith.constant 0 : i32
    %c0_i32_0 = arith.constant 0 : i32
    return %arg0, %c0_i32 : i32, i32
  }
}

</mosaic_0001>

<llo_original>
// kernel: tpu_custom_call.1
$region0: #{tpu_custom_call.1}
  #allocation0 [shape = 'u32[]', space=smem, size = 0x4, offset = 0x4, fixed_abs, tag = 'smem constant byte address 0x4 - core index']
  #allocation1 [shape = 'u32[144,128]{1,0:T(1,128)}', space=vmem, size = 0x12000, scoped, tag = 'internal scratch']
  #allocation2 [shape = 'f32[8,1]{1,0:T(8,128)}', space=vmem, size = 0x1000, scoped, tag = 'scratch operand']
  #allocation3 [shape = 'f32[8,1]{1,0:T(8,128)}', space=vmem, size = 0x1000, scoped, tag = 'scratch operand']
  %s0 = inlined_call_operand.hbm [shape: f32[8,32], index: 0, kind: input, shape index: {}]
  %s1 = inlined_call_operand.hbm [shape: f32[8,32], index: 1, kind: input, shape index: {}]
  %s2 = inlined_call_operand.vmem [shape: f32[8,1], index: 2, kind: output, shape index: {}]
  %s3 = sld [smem:[#allocation0]]
  $region38: #{tpu_custom_call.1} parent=0
    _
  %s5 = ssub.s32 1, %s3
  %s6 = scalar_select 0, %s5, %s3
  $region1: #{tpu_custom_call.1} parent=0
    #allocation4 [shape = 'u8[4096]{0}', space=vmem, size = 0x1000, scoped, tag = 'input window, operand 0, single buffered']
    #allocation5 [shape = 's32[1]{0}', space=sflag, size = 0x4, scoped, tag = 'scoped memory for tpu_custom_call.1']
    #allocation6 [shape = 'u8[4096]{0}', space=vmem, size = 0x1000, scoped, tag = 'input window, operand 1, single buffered']
    #allocation7 [shape = 's32[1]{0}', space=sflag, size = 0x4, scoped, tag = 'scoped memory for tpu_custom_call.1']
    %7 = vsyncpa [#allocation5], 0
    %8 = vsyncpa [#allocation7], 0
    // Predicated region
    $region2: #{tpu_custom_call.1} parent=1 // pred_check
      _
    $region3: #{tpu_custom_call.1} parent=1 // pred_check_branch
      %10 = sbr.rel (0) target = $region5
    $region4: #{tpu_custom_call.1} parent=1 // pred_region
      %s12 = ssub.s32 128, 128
      %13 = vsyncadd [#allocation5], %s12
      %s15 = sshll.u32 [#allocation4], 4
      %s16 = int_to_ptr.vmem [resolvable:$true] %s15
      %18 = dma.hbm_to_vmem [thread:$0]  %s0, 128, %s16, [#allocation5]
    $region5: #{tpu_custom_call.1} parent=1 // pred_fallthru
      _
    // Predicated region
    $region6: #{tpu_custom_call.1} parent=1 // pred_check
      _
    $region7: #{tpu_custom_call.1} parent=1 // pred_check_branch
      %20 = sbr.rel (0) target = $region9
    $region8: #{tpu_custom_call.1} parent=1 // pred_region
      %s22 = ssub.s32 128, 128
      %23 = vsyncadd [#allocation7], %s22
      %s25 = sshll.u32 [#allocation6], 4
      %s26 = int_to_ptr.vmem [resolvable:$true] %s25
      %28 = dma.hbm_to_vmem [thread:$0]  %s1, 128, %s26, [#allocation7]
    $region9: #{tpu_custom_call.1} parent=1 // pred_fallthru
      _
    // Predicated region
    $region10: #{tpu_custom_call.1} parent=1 // pred_check
      _
    $region11: #{tpu_custom_call.1} parent=1 // pred_check_branch
      %30 = sbr.rel (0) target = $region13
    $region12: #{tpu_custom_call.1} parent=1 // pred_region
      %31 = dma.done [#allocation5], 128
    $region13: #{tpu_custom_call.1} parent=1 // pred_fallthru
      _
    // Predicated region
    $region14: #{tpu_custom_call.1} parent=1 // pred_check
      _
    $region15: #{tpu_custom_call.1} parent=1 // pred_check_branch
      %33 = sbr.rel (0) target = $region17
    $region16: #{tpu_custom_call.1} parent=1 // pred_region
      %34 = dma.done [#allocation7], 128
    $region17: #{tpu_custom_call.1} parent=1 // pred_fallthru
      _
    %p35 = scmp.eq.s32.totalorder 0, 0
    // Predicated region
    $region18: #{tpu_custom_call.1} parent=1 // pred_check
      %p36 = pneg %p35
    $region19: #{tpu_custom_call.1} parent=1 // pred_check_branch
      %38 = sbr.rel (%p36) target = $region21
    $region20: #{tpu_custom_call.1} parent=1 // pred_region
      %vm39 = vcmask 7168
      %40 = vst.msk [vmem:[#allocation2] sm:$0xff] %vm39, 0.0
      %41 = vst.msk [vmem:[#allocation3] sm:$0xff] %vm39, 0.0
    $region21: #{tpu_custom_call.1} parent=1 // pred_fallthru
      _
    %v42 = vld [vmem:[#allocation4] sm:$0xff]
    %v43 = vld [vmem:[#allocation6] sm:$0xff]
    %vm44 = vcmask 261120
    %v46 = vsel %vm44, %v42, 0
    %v49 = vsel %vm44, %v43, 0
    %51 = vmatprep.subr.mxu0 0.0
    %52 = vmatpush1.xpose.msra.mxu0 %v49
    %53 = vmatprep.subr.mxu0 0.0
    %54 = vmatpush1.xpose.msra.mxu0 0.0
    %55 = vmatprep.subr.mxu0 0.0
    %56 = vmatpush1.xpose.msra.mxu0 0.0
    %57 = vmatprep.subr.mxu0 0.0
    %58 = vmatpush1.xpose.msra.mxu0 0.0
    %59 = vmatprep.subr.mxu0 0.0
    %60 = vmatpush1.xpose.msra.mxu0 0.0
    %61 = vmatprep.subr.mxu0 0.0
    %62 = vmatpush1.xpose.msra.mxu0 0.0
    %63 = vmatprep.subr.mxu0 0.0
    %64 = vmatpush1.xpose.msra.mxu0 0.0
    %65 = vmatprep.subr.mxu0 0.0
    %66 = vmatpush1.xpose.msra.mxu0 0.0
    %67 = vmatprep.subr.mxu0 0.0
    %68 = vmatpush1.xpose.msra.mxu0 0.0
    %69 = vmatprep.subr.mxu0 0.0
    %70 = vmatpush1.xpose.msra.mxu0 0.0
    %71 = vmatprep.subr.mxu0 0.0
    %72 = vmatpush1.xpose.msra.mxu0 0.0
    %73 = vmatprep.subr.mxu0 0.0
    %74 = vmatpush1.xpose.msra.mxu0 0.0
    %75 = vmatprep.subr.mxu0 0.0
    %76 = vmatpush1.xpose.msra.mxu0 0.0
    %77 = vmatprep.subr.mxu0 0.0
    %78 = vmatpush1.xpose.msra.mxu0 0.0
    %79 = vmatprep.subr.mxu0 0.0
    %80 = vmatpush1.xpose.msra.mxu0 0.0
    %81 = vmatprep.subr.mxu0 0.0
    %82 = vmatpush1.xpose.msra.mxu0 0.0
    %83 = vmatprep.subr.mxu0 0.0
    %84 = vmatpush1.xpose.msra.mxu0 0.0
    %85 = vmatprep.subr.mxu0 0.0
    %86 = vmatpush1.xpose.msra.mxu0 0.0
    %87 = vmatprep.subr.mxu0 0.0
    %88 = vmatpush1.xpose.msra.mxu0 0.0
    %89 = vmatprep.subr.mxu0 0.0
    %90 = vmatpush1.xpose.msra.mxu0 0.0
    %91 = vmatprep.subr.mxu0 0.0
    %92 = vmatpush1.xpose.msra.mxu0 0.0
    %93 = vmatprep.subr.mxu0 0.0
    %94 = vmatpush1.xpose.msra.mxu0 0.0
    %95 = vmatprep.subr.mxu0 0.0
    %96 = vmatpush1.xpose.msra.mxu0 0.0
    %97 = vmatprep.subr.mxu0 0.0
    %98 = vmatpush1.xpose.msra.mxu0 0.0
    %99 = vmatprep.subr.mxu0 0.0
    %100 = vmatpush1.xpose.msra.mxu0 0.0
    %101 = vmatprep.subr.mxu0 0.0
    %102 = vmatpush1.xpose.msra.mxu0 0.0
    %103 = vmatprep.subr.mxu0 0.0
    %104 = vmatpush1.xpose.msra.mxu0 0.0
    %105 = vmatprep.subr.mxu0 0.0
    %106 = vmatpush1.xpose.msra.mxu0 0.0
    %107 = vmatprep.subr.mxu0 0.0
    %108 = vmatpush1.xpose.msra.mxu0 0.0
    %109 = vmatprep.subr.mxu0 0.0
    %110 = vmatpush1.xpose.msra.mxu0 0.0
    %111 = vmatprep.subr.mxu0 0.0
    %112 = vmatpush1.xpose.msra.mxu0 0.0
    %113 = vmatprep.subr.mxu0 0.0
    %114 = vmatpush1.xpose.msra.mxu0 0.0
    %115 = vmatprep.mubr.f32.mxu0 0.0
    %116 = vmatmul.mubr.f32.gmra.mrb[0].mxu0 %v46
    %v117 = vpop.f32.mrb[0].mxu0
    %v118 = vadd.f32 0.0, %v117
    %v119 = vpop.f32.mrb[0].mxu0
    %120 = vdwg.mxu0
    %s121 = smul.u32 0, 8
    %s122 = smul.u32 0, 8
    %s123 = sadd.s32 %s121, 8
    %p124 = scmp.lt.s32.totalorder %s122, %s123
    %s125 = sadd.s32 %s122, 8
    %p126 = scmp.lt.s32.totalorder %s121, %s125
    %p127 = pnand %p124, %p126
    %p128 = pneg %p127
    // Predicated region
    $region22: #{tpu_custom_call.1} parent=1 // pred_check
      _
    $region23: #{tpu_custom_call.1} parent=1 // pred_check_branch
      %130 = sbr.rel (%p127) target = $region25
    $region24: #{tpu_custom_call.1} parent=1 // pred_region
      %v131 = vlaneseq
      %v132 = vshrl.u32 %v131, 7
      %v133 = vstv %s121
      %v134 = vadd.s32 %v133, %v132
      %v135 = vlaneseq
      %v136 = vand.u32 %v135, 127
      %v137 = vstv %s122
      %v138 = vadd.s32 %v137, %v136
      %v139 = vld [vmem:[#allocation3] sm:$0xff]
      %vm140 = vcmp.eq.s32.totalorder %v134, %v138
      %v141 = vsel %vm140, %v118, 0.0
      %vm142 = vcmask 64512
      %v143 = vsel %vm142, %v141, 0.0
      %144 = vadd.xlane.f32.xlu0 %v143
      %v145 = vpop.xlane.xlu0 %144
      %v146 = vadd.f32 %v139, %v145
      %vm147 = vcmask 7168
      %148 = vst.msk [vmem:[#allocation3] sm:$0xff] %vm147, %v146
    $region25: #{tpu_custom_call.1} parent=1 // pred_fallthru
      _
    %v149 = vld [vmem:[#allocation2] sm:$0xff]
    %v150 = vsub.f32 %v118, 20.0
    %v151 = vmul.f32 %v150, 1.442695
    %v152 = vpow.pop %v151
    %vm153 = vcmask 64512
    %v154 = vsel %vm153, %v152, 0.0
    %155 = vadd.xlane.f32.xlu0 %v154
    %v156 = vpop.xlane.xlu0 %155
    %v157 = vadd.f32 %v149, %v156
    %vm158 = vcmask 7168
    %159 = vst.msk [vmem:[#allocation2] sm:$0xff] %vm158, %v157
    // Predicated region
    $region26: #{tpu_custom_call.1} parent=1 // pred_check
      %p160 = pneg %p35
    $region27: #{tpu_custom_call.1} parent=1 // pred_check_branch
      %162 = sbr.rel (%p160) target = $region29
    $region28: #{tpu_custom_call.1} parent=1 // pred_region
      %v163 = vld [vmem:[#allocation2] sm:$0xff]
      %v164 = vlog2.pop %v163
      %v165 = vmul.f32 %v164, 0.6931472
      %v166 = vadd.f32 %v165, 20.0
      %v167 = vld [vmem:[#allocation3] sm:$0xff]
      %v168 = vsub.f32 %v166, %v167
      %169 = vst.msk [vmem:[%s2] sm:$0xff] %vm158, %v168
    $region29: #{tpu_custom_call.1} parent=1 // pred_fallthru
      _
    // Predicated region
    $region30: #{tpu_custom_call.1} parent=1 // pred_check
      _
    $region31: #{tpu_custom_call.1} parent=1 // pred_check_branch
      %171 = sbr.rel (0) target = $region33
    $region32: #{tpu_custom_call.1} parent=1 // pred_region
      _
    $region33: #{tpu_custom_call.1} parent=1 // pred_fallthru
      _
    // Predicated region
    $region34: #{tpu_custom_call.1} parent=1 // pred_check
      _
    $region35: #{tpu_custom_call.1} parent=1 // pred_check_branch
      %173 = sbr.rel (0) target = $region37
    $region36: #{tpu_custom_call.1} parent=1 // pred_region
      _
    $region37: #{tpu_custom_call.1} parent=1 // pred_fallthru
      _
    %174 = vsyncpa [#allocation5], 1
    %175 = vsyncpa [#allocation7], 1

</llo_original>
